<compile_context>
chip_gen: v6e
topology: v6e:2x2x1
jax: 0.10.0
libtpu: 0.0.40
codegen_flags: <defaults>
</compile_context>

<pallas_src>
import jax
import jax.numpy as jnp
from jax.experimental import pallas as pl
from jax.experimental.pallas import tpu as pltpu

HIDDEN_SIZE = 64


def _dqn_kernel(xt_ref, w1t_ref, b1t_ref, w2t_ref, b2t_ref, ot_ref):
    xt = xt_ref[...].astype(jnp.float32)        # (D_in, TB)  batch on lanes
    w1t = w1t_ref[...].astype(jnp.float32)      # (H, D_in)
    d_in = xt.shape[0]

    # ---- Layer 1: Linear(D_in -> H) + ReLU --------------------------------
    if d_in <= 8:
        # K is tiny: unrolled VPU broadcast-FMAs (outer-product accumulate).
        # Keeps the MXU free and avoids a ~3%-filled vmatmul push.
        h = b1t_ref[...].astype(jnp.float32) + w1t[:, 0:1] * xt[0:1, :]
        for k in range(1, d_in):
            h = h + w1t[:, k:k + 1] * xt[k:k + 1, :]
    else:
        h = jnp.dot(w1t, xt, preferred_element_type=jnp.float32)
        h = h + b1t_ref[...].astype(jnp.float32)
    h = jnp.maximum(h, 0.0)                     # (H, TB)

    # ---- Layer 2: Linear(H -> A) on the MXU (K = 64), f32 accumulate ------
    y = jnp.dot(w2t_ref[...], h.astype(w2t_ref.dtype),
                preferred_element_type=jnp.float32)
    y = y + b2t_ref[...].astype(jnp.float32)    # (A, 1) broadcast over lanes
    ot_ref[...] = y.astype(ot_ref.dtype)        # (A, TB) lane-dense store


def dqn_forward(x, w1, b1, w2, b2, *, block_b=2048):
    """DQN forward: relu(x @ w1 + b1) @ w2 + b2.

    x: (B, D_in); w1: (D_in, H); b1: (1, H); w2: (H, A); b2: (1, A).
    Returns (B, A) Q-values.
    """
    assert block_b % 128 == 0
    B, d_in = x.shape
    H = w1.shape[1]
    A = w2.shape[1]

    # Transposed layout: batch on the 128-lane axis everywhere.
    xt = x.T                                    # (D_in, B)
    w1t = w1.T                                  # (H, D_in)
    b1t = b1.reshape(H, 1)
    w2t = w2.T                                  # (A, H)
    b2t = b2.reshape(A, 1)

    if B <= block_b:
        tb, bp = B, B                           # single full-extent block
    else:
        tb = block_b                            # multiple of 128 -> lane aligned
        bp = ((B + tb - 1) // tb) * tb
        if bp != B:
            xt = jnp.pad(xt, ((0, 0), (0, bp - B)))
    grid = (bp // tb,)

    cost = pl.CostEstimate(
        flops=2 * B * (d_in * H + H * A),
        transcendentals=0,
        bytes_accessed=4 * (B * d_in + d_in * H + H + H * A + A + B * A),
    )

    yt = pl.pallas_call(
        _dqn_kernel,
        out_shape=jax.ShapeDtypeStruct((A, bp), x.dtype),
        grid_spec=pltpu.PrefetchScalarGridSpec(
            num_scalar_prefetch=0,
            grid=grid,
            in_specs=[
                pl.BlockSpec((d_in, tb), lambda i: (0, i)),   # x tile (lane-dense)
                pl.BlockSpec((H, d_in), lambda i: (0, 0)),    # weights pinned in VMEM
                pl.BlockSpec((H, 1), lambda i: (0, 0)),
                pl.BlockSpec((A, H), lambda i: (0, 0)),
                pl.BlockSpec((A, 1), lambda i: (0, 0)),
            ],
            out_specs=pl.BlockSpec((A, tb), lambda i: (0, i)),
        ),
        compiler_params=pltpu.CompilerParams(
            dimension_semantics=("parallel",),   # megacore-shard batch axis (v7x)
        ),
        cost_estimate=cost,
    )(xt, w1t, b1t, w2t, b2t)

    return yt[:, :B].T                          # (B, A)


def init_params(key, input_dim, n_actions):
    """Deterministic synthetic init (PyTorch-shaped: Linear(in,out))."""
    k1, k2, k3, k4 = jax.random.split(key, 4)
    # Mimic nn.Linear default uniform(-1/sqrt(fan_in), 1/sqrt(fan_in)) scale.
    s1 = 1.0 / jnp.sqrt(jnp.float32(input_dim))
    s2 = 1.0 / jnp.sqrt(jnp.float32(HIDDEN_SIZE))
    w1 = jax.random.uniform(k1, (input_dim, HIDDEN_SIZE), jnp.float32, -s1, s1)
    b1 = jax.random.uniform(k2, (1, HIDDEN_SIZE), jnp.float32, -s1, s1)
    w2 = jax.random.uniform(k3, (HIDDEN_SIZE, n_actions), jnp.float32, -s2, s2)
    b2 = jax.random.uniform(k4, (1, n_actions), jnp.float32, -s2, s2)
    return w1, b1, w2, b2


if __name__ == "__main__":
    key = jax.random.PRNGKey(0)
    k_in, k_param, k_big = jax.random.split(key, 3)

    input_dim = 4      # e.g. CartPole observation size: input_shape = (4,)
    n_actions = 2

    w1, b1, w2, b2 = init_params(k_param, input_dim, n_actions)

    def ref_fn(x):
        # Pure-JAX reference (same math as torch nn.Sequential forward).
        return jnp.maximum(x @ w1 + b1, 0.0) @ w2 + b2

    # Small spec-consistent shape (single full-extent block, grid=(1,)).
    x_small = jax.random.normal(k_in, (2, input_dim), dtype=jnp.float32)
    out_small = jax.block_until_ready(dqn_forward(x_small, w1, b1, w2, b2))
    assert out_small.shape == (2, n_actions)
    assert jnp.allclose(out_small, ref_fn(x_small), atol=1e-5, rtol=1e-5)

    # Larger batch exercising the batch grid + lane-padding path.
    x_big = jax.random.normal(k_big, (300, input_dim), dtype=jnp.float32)
    out_big = jax.block_until_ready(
        dqn_forward(x_big, w1, b1, w2, b2, block_b=128))
    assert out_big.shape == (300, n_actions)
    assert jnp.allclose(out_big, ref_fn(x_big), atol=1e-5, rtol=1e-5)

    print("KERNEL_OK")
</pallas_src>

<mosaic_0001>
module attributes {stable_mosaic.version = 11 : i64} {
  func.func @_dqn_kernel(%arg0: i32, %arg1: memref<4x2xf32, #tpu.memory_space<vmem>>, %arg2: memref<64x4xf32, #tpu.memory_space<vmem>>, %arg3: memref<64x1xf32, #tpu.memory_space<vmem>>, %arg4: memref<2x64xf32, #tpu.memory_space<vmem>>, %arg5: memref<2x1xf32, #tpu.memory_space<vmem>>, %arg6: memref<2x2xf32, #tpu.memory_space<vmem>>) attributes {dimension_semantics = [#tpu.dimension_semantics<parallel>], iteration_bounds = array<i64: 1>, scalar_prefetch = 0 : i64, scratch_operands = 0 : i64, tpu.core_type = #tpu.core_type<tc>, window_params = [{transform_indices = @transform_0, window_bounds = array<i64: 4, 2>}, {pipeline_mode = #tpu.pipeline_mode<synchronous>, transform_indices = @transform_1, window_bounds = array<i64: 64, 4>}, {pipeline_mode = #tpu.pipeline_mode<synchronous>, transform_indices = @transform_2, window_bounds = array<i64: 64, 1>}, {pipeline_mode = #tpu.pipeline_mode<synchronous>, transform_indices = @transform_3, window_bounds = array<i64: 2, 64>}, {pipeline_mode = #tpu.pipeline_mode<synchronous>, transform_indices = @transform_4, window_bounds = array<i64: 2, 1>}, {transform_indices = @transform_5, window_bounds = array<i64: 2, 2>}]} {
    %c0 = arith.constant 0 : index
    %c0_0 = arith.constant 0 : index
    %0 = vector.load %arg1[%c0, %c0_0] : memref<4x2xf32, #tpu.memory_space<vmem>>, vector<4x2xf32>
    %c0_1 = arith.constant 0 : index
    %c0_2 = arith.constant 0 : index
    %1 = vector.load %arg2[%c0_1, %c0_2] : memref<64x4xf32, #tpu.memory_space<vmem>>, vector<64x4xf32>
    %c0_3 = arith.constant 0 : index
    %c0_4 = arith.constant 0 : index
    %2 = vector.load %arg3[%c0_3, %c0_4] : memref<64x1xf32, #tpu.memory_space<vmem>>, vector<64x1xf32>
    %3 = vector.extract_strided_slice %1 {offsets = [0, 0], sizes = [64, 1], strides = [1, 1]} : vector<64x4xf32> to vector<64x1xf32>
    %4 = vector.extract_strided_slice %0 {offsets = [0, 0], sizes = [1, 2], strides = [1, 1]} : vector<4x2xf32> to vector<1x2xf32>
    %5 = vector.broadcast %3 : vector<64x1xf32> to vector<64x2xf32>
    %6 = vector.broadcast %4 : vector<1x2xf32> to vector<64x2xf32>
    %7 = arith.mulf %5, %6 : vector<64x2xf32>
    %8 = vector.broadcast %2 : vector<64x1xf32> to vector<64x2xf32>
    %9 = arith.addf %8, %7 : vector<64x2xf32>
    %10 = vector.extract_strided_slice %1 {offsets = [0, 1], sizes = [64, 1], strides = [1, 1]} : vector<64x4xf32> to vector<64x1xf32>
    %11 = vector.extract_strided_slice %0 {offsets = [1, 0], sizes = [1, 2], strides = [1, 1]} : vector<4x2xf32> to vector<1x2xf32>
    %12 = vector.broadcast %10 : vector<64x1xf32> to vector<64x2xf32>
    %13 = vector.broadcast %11 : vector<1x2xf32> to vector<64x2xf32>
    %14 = arith.mulf %12, %13 : vector<64x2xf32>
    %15 = arith.addf %9, %14 : vector<64x2xf32>
    %16 = vector.extract_strided_slice %1 {offsets = [0, 2], sizes = [64, 1], strides = [1, 1]} : vector<64x4xf32> to vector<64x1xf32>
    %17 = vector.extract_strided_slice %0 {offsets = [2, 0], sizes = [1, 2], strides = [1, 1]} : vector<4x2xf32> to vector<1x2xf32>
    %18 = vector.broadcast %16 : vector<64x1xf32> to vector<64x2xf32>
    %19 = vector.broadcast %17 : vector<1x2xf32> to vector<64x2xf32>
    %20 = arith.mulf %18, %19 : vector<64x2xf32>
    %21 = arith.addf %15, %20 : vector<64x2xf32>
    %22 = vector.extract_strided_slice %1 {offsets = [0, 3], sizes = [64, 1], strides = [1, 1]} : vector<64x4xf32> to vector<64x1xf32>
    %23 = vector.extract_strided_slice %0 {offsets = [3, 0], sizes = [1, 2], strides = [1, 1]} : vector<4x2xf32> to vector<1x2xf32>
    %24 = vector.broadcast %22 : vector<64x1xf32> to vector<64x2xf32>
    %25 = vector.broadcast %23 : vector<1x2xf32> to vector<64x2xf32>
    %26 = arith.mulf %24, %25 : vector<64x2xf32>
    %27 = arith.addf %21, %26 : vector<64x2xf32>
    %cst = arith.constant 0.000000e+00 : f32
    %28 = vector.broadcast %cst : f32 to vector<64x2xf32>
    %29 = arith.maximumf %27, %28 : vector<64x2xf32>
    %c0_5 = arith.constant 0 : index
    %c0_6 = arith.constant 0 : index
    %30 = vector.load %arg4[%c0_5, %c0_6] : memref<2x64xf32, #tpu.memory_space<vmem>>, vector<2x64xf32>
    %cst_7 = arith.constant dense<0.000000e+00> : vector<2x2xf32>
    %31 = tpu.matmul %30, %29, %cst_7 {dimension_numbers = #tpu.dot_dimension_numbers<[1], [0], [0], [1], [0, 0, 1, 1], [], []>} : vector<2x64xf32>, vector<64x2xf32>, vector<2x2xf32> -> vector<2x2xf32>
    %c0_8 = arith.constant 0 : index
    %c0_9 = arith.constant 0 : index
    %32 = vector.load %arg5[%c0_8, %c0_9] : memref<2x1xf32, #tpu.memory_space<vmem>>, vector<2x1xf32>
    %33 = vector.broadcast %32 : vector<2x1xf32> to vector<2x2xf32>
    %34 = arith.addf %31, %33 : vector<2x2xf32>
    %c0_10 = arith.constant 0 : index
    %c0_11 = arith.constant 0 : index
    %35 = vector.load %arg6[%c0_10, %c0_11] : memref<2x2xf32, #tpu.memory_space<vmem>>, vector<2x2xf32>
    tpu.vector_store %arg6[%c0_10, %c0_11], %34 {strides = array<i32>} : memref<2x2xf32, #tpu.memory_space<vmem>>, vector<2x2xf32>,
    return
  }
  func.func @transform_0(%arg0: i32) -> (i32, i32) {
    %c0_i32 = arith.constant 0 : i32
    %c0_i32_0 = arith.constant 0 : i32
    return %c0_i32, %arg0 : i32, i32
  }
  func.func @transform_1(%arg0: i32) -> (i32, i32) {
    %c0_i32 = arith.constant 0 : i32
    %c0_i32_0 = arith.constant 0 : i32
    %c0_i32_1 = arith.constant 0 : i32
    return %c0_i32, %c0_i32_0 : i32, i32
  }
  func.func @transform_2(%arg0: i32) -> (i32, i32) {
    %c0_i32 = arith.constant 0 : i32
    %c0_i32_0 = arith.constant 0 : i32
    %c0_i32_1 = arith.constant 0 : i32
    return %c0_i32, %c0_i32_0 : i32, i32
  }
  func.func @transform_3(%arg0: i32) -> (i32, i32) {
    %c0_i32 = arith.constant 0 : i32
    %c0_i32_0 = arith.constant 0 : i32
    %c0_i32_1 = arith.constant 0 : i32
    return %c0_i32, %c0_i32_0 : i32, i32
  }
  func.func @transform_4(%arg0: i32) -> (i32, i32) {
    %c0_i32 = arith.constant 0 : i32
    %c0_i32_0 = arith.constant 0 : i32
    %c0_i32_1 = arith.constant 0 : i32
    return %c0_i32, %c0_i32_0 : i32, i32
  }
  func.func @transform_5(%arg0: i32) -> (i32, i32) {
    %c0_i32 = arith.constant 0 : i32
    %c0_i32_0 = arith.constant 0 : i32
    return %c0_i32, %arg0 : i32, i32
  }
}

</mosaic_0001>

<llo_original>
// kernel: tpu_custom_call.1
$region0: #{tpu_custom_call.1}
  #allocation0 [shape = 'u32[]', space=smem, size = 0x4, offset = 0x4, fixed_abs, tag = 'smem constant byte address 0x4 - core index']
  #allocation1 [shape = 'u32[144,128]{1,0:T(1,128)}', space=vmem, size = 0x12000, scoped, tag = 'internal scratch']
  %s0 = inlined_call_operand.vmem [shape: f32[4,2], index: 0, kind: input, shape index: {}]
  %s1 = inlined_call_operand.vmem [shape: f32[64,4], index: 1, kind: input, shape index: {}]
  %s2 = inlined_call_operand.vmem [shape: f32[64,1], index: 2, kind: input, shape index: {}]
  %s3 = inlined_call_operand.vmem [shape: f32[2,64], index: 3, kind: input, shape index: {}]
  %s4 = inlined_call_operand.vmem [shape: f32[2,1], index: 4, kind: input, shape index: {}]
  %s5 = inlined_call_operand.hbm [shape: f32[2,2], index: 5, kind: output, shape index: {}]
  %s6 = sld [smem:[#allocation0]]
  $region30: #{tpu_custom_call.1} parent=0
    _
  %s8 = ssub.s32 1, %s6
  %s9 = scalar_select 0, %s8, %s6
  $region1: #{tpu_custom_call.1} parent=0
    #allocation2 [shape = 'u8[1024]{0}', space=vmem, size = 0x400, scoped, tag = 'output window, operand 0, single buffered']
    #allocation3 [shape = 's32[1]{0}', space=sflag, size = 0x4, scoped, tag = 'scoped memory for tpu_custom_call.1']
    %10 = vsyncpa [#allocation3], 0
    // Predicated region
    $region2: #{tpu_custom_call.1} parent=1 // pred_check
      _
    $region3: #{tpu_custom_call.1} parent=1 // pred_check_branch
      %12 = sbr.rel (0) target = $region5
    $region4: #{tpu_custom_call.1} parent=1 // pred_region
      _
    $region5: #{tpu_custom_call.1} parent=1 // pred_fallthru
      _
    // Predicated region
    $region6: #{tpu_custom_call.1} parent=1 // pred_check
      _
    $region7: #{tpu_custom_call.1} parent=1 // pred_check_branch
      %14 = sbr.rel (0) target = $region9
    $region8: #{tpu_custom_call.1} parent=1 // pred_region
      _
    $region9: #{tpu_custom_call.1} parent=1 // pred_fallthru
      _
    // Predicated region
    $region10: #{tpu_custom_call.1} parent=1 // pred_check
      _
    $region11: #{tpu_custom_call.1} parent=1 // pred_check_branch
      %16 = sbr.rel (0) target = $region13
    $region12: #{tpu_custom_call.1} parent=1 // pred_region
      _
    $region13: #{tpu_custom_call.1} parent=1 // pred_fallthru
      _
    // Predicated region
    $region14: #{tpu_custom_call.1} parent=1 // pred_check
      _
    $region15: #{tpu_custom_call.1} parent=1 // pred_check_branch
      %18 = sbr.rel (0) target = $region17
    $region16: #{tpu_custom_call.1} parent=1 // pred_region
      _
    $region17: #{tpu_custom_call.1} parent=1 // pred_fallthru
      _
    // Predicated region
    $region18: #{tpu_custom_call.1} parent=1 // pred_check
      _
    $region19: #{tpu_custom_call.1} parent=1 // pred_check_branch
      %20 = sbr.rel (0) target = $region21
    $region20: #{tpu_custom_call.1} parent=1 // pred_region
      _
    $region21: #{tpu_custom_call.1} parent=1 // pred_fallthru
      _
    %v21 = vld [vmem:[%s0] sm:$0xf]
    %v22 = vld [vmem:[%s1] sm:$0xff]
    %v23 = vld [vmem:[%s1 + $0x8] sm:$0xff]
    %v24 = vld [vmem:[%s1 + $0x10] sm:$0xff]
    %v25 = vld [vmem:[%s1 + $0x18] sm:$0xff]
    %v26 = vld [vmem:[%s1 + $0x20] sm:$0xff]
    %v27 = vld [vmem:[%s1 + $0x28] sm:$0xff]
    %v28 = vld [vmem:[%s1 + $0x30] sm:$0xff]
    %v29 = vld [vmem:[%s1 + $0x38] sm:$0xff]
    %v30 = vld [vmem:[%s2] sm:$0xff]
    %v31 = vld [vmem:[%s2 + $0x8] sm:$0xff]
    %v32 = vld [vmem:[%s2 + $0x10] sm:$0xff]
    %v33 = vld [vmem:[%s2 + $0x18] sm:$0xff]
    %v34 = vld [vmem:[%s2 + $0x20] sm:$0xff]
    %v35 = vld [vmem:[%s2 + $0x28] sm:$0xff]
    %v36 = vld [vmem:[%s2 + $0x30] sm:$0xff]
    %v37 = vld [vmem:[%s2 + $0x38] sm:$0xff]
    %39 = vset.pattern.permute.xlu0 0
    %40 = vperm.xlu0 %39, %v22
    %v41 = vpop.permute.xlu0 %40
    %44 = vset.pattern.permute.xlu0 0
    %45 = vperm.xlu0 %44, %v23
    %v46 = vpop.permute.xlu0 %45
    %49 = vset.pattern.permute.xlu0 0
    %50 = vperm.xlu0 %49, %v24
    %v51 = vpop.permute.xlu0 %50
    %54 = vset.pattern.permute.xlu0 0
    %55 = vperm.xlu0 %54, %v25
    %v56 = vpop.permute.xlu0 %55
    %59 = vset.pattern.permute.xlu0 0
    %60 = vperm.xlu0 %59, %v26
    %v61 = vpop.permute.xlu0 %60
    %64 = vset.pattern.permute.xlu0 0
    %65 = vperm.xlu0 %64, %v27
    %v66 = vpop.permute.xlu0 %65
    %69 = vset.pattern.permute.xlu0 0
    %70 = vperm.xlu0 %69, %v28
    %v71 = vpop.permute.xlu0 %70
    %74 = vset.pattern.permute.xlu0 0
    %75 = vperm.xlu0 %74, %v29
    %v76 = vpop.permute.xlu0 %75
    %v78 = vlaneseq
    %v79 = vshrl.u32 %v78, 7
    %v80 = vsub.s32 0, %v79
    %v81 = vrot.slane %v21, %v80
    %v82 = vmul.f32 %v41, %v81
    %v83 = vmul.f32 %v46, %v81
    %v84 = vmul.f32 %v51, %v81
    %v85 = vmul.f32 %v56, %v81
    %v86 = vmul.f32 %v61, %v81
    %v87 = vmul.f32 %v66, %v81
    %v88 = vmul.f32 %v71, %v81
    %v89 = vmul.f32 %v76, %v81
    %91 = vset.pattern.permute.xlu0 0
    %92 = vperm.xlu0 %91, %v30
    %v93 = vpop.permute.xlu0 %92
    %96 = vset.pattern.permute.xlu0 0
    %97 = vperm.xlu0 %96, %v31
    %v98 = vpop.permute.xlu0 %97
    %101 = vset.pattern.permute.xlu0 0
    %102 = vperm.xlu0 %101, %v32
    %v103 = vpop.permute.xlu0 %102
    %106 = vset.pattern.permute.xlu0 0
    %107 = vperm.xlu0 %106, %v33
    %v108 = vpop.permute.xlu0 %107
    %111 = vset.pattern.permute.xlu0 0
    %112 = vperm.xlu0 %111, %v34
    %v113 = vpop.permute.xlu0 %112
    %116 = vset.pattern.permute.xlu0 0
    %117 = vperm.xlu0 %116, %v35
    %v118 = vpop.permute.xlu0 %117
    %121 = vset.pattern.permute.xlu0 0
    %122 = vperm.xlu0 %121, %v36
    %v123 = vpop.permute.xlu0 %122
    %126 = vset.pattern.permute.xlu0 0
    %127 = vperm.xlu0 %126, %v37
    %v128 = vpop.permute.xlu0 %127
    %v130 = vadd.f32 %v93, %v82
    %v131 = vadd.f32 %v98, %v83
    %v132 = vadd.f32 %v103, %v84
    %v133 = vadd.f32 %v108, %v85
    %v134 = vadd.f32 %v113, %v86
    %v135 = vadd.f32 %v118, %v87
    %v136 = vadd.f32 %v123, %v88
    %v137 = vadd.f32 %v128, %v89
    %138 = vset.pattern.permute.xlu0 1
    %139 = vperm.xlu0 %138, %v22
    %v140 = vpop.permute.xlu0 %139
    %142 = vset.pattern.permute.xlu0 1
    %143 = vperm.xlu0 %142, %v23
    %v144 = vpop.permute.xlu0 %143
    %146 = vset.pattern.permute.xlu0 1
    %147 = vperm.xlu0 %146, %v24
    %v148 = vpop.permute.xlu0 %147
    %150 = vset.pattern.permute.xlu0 1
    %151 = vperm.xlu0 %150, %v25
    %v152 = vpop.permute.xlu0 %151
    %154 = vset.pattern.permute.xlu0 1
    %155 = vperm.xlu0 %154, %v26
    %v156 = vpop.permute.xlu0 %155
    %158 = vset.pattern.permute.xlu0 1
    %159 = vperm.xlu0 %158, %v27
    %v160 = vpop.permute.xlu0 %159
    %162 = vset.pattern.permute.xlu0 1
    %163 = vperm.xlu0 %162, %v28
    %v164 = vpop.permute.xlu0 %163
    %166 = vset.pattern.permute.xlu0 1
    %167 = vperm.xlu0 %166, %v29
    %v168 = vpop.permute.xlu0 %167
    %v170 = vlaneseq
    %v171 = vshrl.u32 %v170, 7
    %v172 = vsub.s32 1, %v171
    %v173 = vrot.slane %v21, %v172
    %v174 = vmul.f32 %v140, %v173
    %v175 = vmul.f32 %v144, %v173
    %v176 = vmul.f32 %v148, %v173
    %v177 = vmul.f32 %v152, %v173
    %v178 = vmul.f32 %v156, %v173
    %v179 = vmul.f32 %v160, %v173
    %v180 = vmul.f32 %v164, %v173
    %v181 = vmul.f32 %v168, %v173
    %v182 = vadd.f32 %v130, %v174
    %v183 = vadd.f32 %v131, %v175
    %v184 = vadd.f32 %v132, %v176
    %v185 = vadd.f32 %v133, %v177
    %v186 = vadd.f32 %v134, %v178
    %v187 = vadd.f32 %v135, %v179
    %v188 = vadd.f32 %v136, %v180
    %v189 = vadd.f32 %v137, %v181
    %190 = vset.pattern.permute.xlu0 2
    %191 = vperm.xlu0 %190, %v22
    %v192 = vpop.permute.xlu0 %191
    %194 = vset.pattern.permute.xlu0 2
    %195 = vperm.xlu0 %194, %v23
    %v196 = vpop.permute.xlu0 %195
    %198 = vset.pattern.permute.xlu0 2
    %199 = vperm.xlu0 %198, %v24
    %v200 = vpop.permute.xlu0 %199
    %202 = vset.pattern.permute.xlu0 2
    %203 = vperm.xlu0 %202, %v25
    %v204 = vpop.permute.xlu0 %203
    %206 = vset.pattern.permute.xlu0 2
    %207 = vperm.xlu0 %206, %v26
    %v208 = vpop.permute.xlu0 %207
    %210 = vset.pattern.permute.xlu0 2
    %211 = vperm.xlu0 %210, %v27
    %v212 = vpop.permute.xlu0 %211
    %214 = vset.pattern.permute.xlu0 2
    %215 = vperm.xlu0 %214, %v28
    %v216 = vpop.permute.xlu0 %215
    %218 = vset.pattern.permute.xlu0 2
    %219 = vperm.xlu0 %218, %v29
    %v220 = vpop.permute.xlu0 %219
    %v222 = vlaneseq
    %v223 = vshrl.u32 %v222, 7
    %v224 = vsub.s32 2, %v223
    %v225 = vrot.slane %v21, %v224
    %v226 = vmul.f32 %v192, %v225
    %v227 = vmul.f32 %v196, %v225
    %v228 = vmul.f32 %v200, %v225
    %v229 = vmul.f32 %v204, %v225
    %v230 = vmul.f32 %v208, %v225
    %v231 = vmul.f32 %v212, %v225
    %v232 = vmul.f32 %v216, %v225
    %v233 = vmul.f32 %v220, %v225
    %v234 = vadd.f32 %v182, %v226
    %v235 = vadd.f32 %v183, %v227
    %v236 = vadd.f32 %v184, %v228
    %v237 = vadd.f32 %v185, %v229
    %v238 = vadd.f32 %v186, %v230
    %v239 = vadd.f32 %v187, %v231
    %v240 = vadd.f32 %v188, %v232
    %v241 = vadd.f32 %v189, %v233
    %242 = vset.pattern.permute.xlu0 3
    %243 = vperm.xlu0 %242, %v22
    %v244 = vpop.permute.xlu0 %243
    %246 = vset.pattern.permute.xlu0 3
    %247 = vperm.xlu0 %246, %v23
    %v248 = vpop.permute.xlu0 %247
    %250 = vset.pattern.permute.xlu0 3
    %251 = vperm.xlu0 %250, %v24
    %v252 = vpop.permute.xlu0 %251
    %254 = vset.pattern.permute.xlu0 3
    %255 = vperm.xlu0 %254, %v25
    %v256 = vpop.permute.xlu0 %255
    %258 = vset.pattern.permute.xlu0 3
    %259 = vperm.xlu0 %258, %v26
    %v260 = vpop.permute.xlu0 %259
    %262 = vset.pattern.permute.xlu0 3
    %263 = vperm.xlu0 %262, %v27
    %v264 = vpop.permute.xlu0 %263
    %266 = vset.pattern.permute.xlu0 3
    %267 = vperm.xlu0 %266, %v28
    %v268 = vpop.permute.xlu0 %267
    %270 = vset.pattern.permute.xlu0 3
    %271 = vperm.xlu0 %270, %v29
    %v272 = vpop.permute.xlu0 %271
    %v274 = vlaneseq
    %v275 = vshrl.u32 %v274, 7
    %v276 = vsub.s32 3, %v275
    %v277 = vrot.slane %v21, %v276
    %v278 = vmul.f32 %v244, %v277
    %v279 = vmul.f32 %v248, %v277
    %v280 = vmul.f32 %v252, %v277
    %v281 = vmul.f32 %v256, %v277
    %v282 = vmul.f32 %v260, %v277
    %v283 = vmul.f32 %v264, %v277
    %v284 = vmul.f32 %v268, %v277
    %v285 = vmul.f32 %v272, %v277
    %v286 = vadd.f32 %v234, %v278
    %v287 = vadd.f32 %v235, %v279
    %v288 = vadd.f32 %v236, %v280
    %v289 = vadd.f32 %v237, %v281
    %v290 = vadd.f32 %v238, %v282
    %v291 = vadd.f32 %v239, %v283
    %v292 = vadd.f32 %v240, %v284
    %v293 = vadd.f32 %v241, %v285
    %v294 = vmax.f32 %v286, 0.0
    %v295 = vmax.f32 %v287, 0.0
    %v296 = vmax.f32 %v288, 0.0
    %v297 = vmax.f32 %v289, 0.0
    %v298 = vmax.f32 %v290, 0.0
    %v299 = vmax.f32 %v291, 0.0
    %v300 = vmax.f32 %v292, 0.0
    %v301 = vmax.f32 %v293, 0.0
    %v302 = vld [vmem:[%s3] sm:$0x3]
    %v303 = vld [vmem:[%s4] sm:$0x3]
    %305 = vset.pattern.permute.xlu0 0
    %306 = vperm.xlu0 %305, %v303
    %v307 = vpop.permute.xlu0 %306
    %vm309 = vcmask 523264
    %v311 = vsel %vm309, %v302, 0
    %313 = vmatprep.subr.mxu0 0.0
    %314 = vmatpush1.msra.mxu0 0.0
    %315 = vmatprep.subr.mxu0 0.0
    %316 = vmatpush1.msra.mxu0 0.0
    %317 = vmatprep.subr.mxu0 0.0
    %318 = vmatpush1.msra.mxu0 0.0
    %319 = vmatprep.subr.mxu0 0.0
    %320 = vmatpush1.msra.mxu0 0.0
    %321 = vmatprep.subr.mxu0 0.0
    %322 = vmatpush1.msra.mxu0 0.0
    %323 = vmatprep.subr.mxu0 0.0
    %324 = vmatpush1.msra.mxu0 0.0
    %325 = vmatprep.subr.mxu0 0.0
    %326 = vmatpush1.msra.mxu0 0.0
    %327 = vmatprep.subr.mxu0 0.0
    %328 = vmatpush1.msra.mxu0 0.0
    %329 = vmatprep.subr.mxu0 0.0
    %330 = vmatpush1.msra.mxu0 %v301
    %331 = vmatprep.subr.mxu0 0.0
    %332 = vmatpush1.msra.mxu0 %v300
    %333 = vmatprep.subr.mxu0 0.0
    %334 = vmatpush1.msra.mxu0 %v299
    %335 = vmatprep.subr.mxu0 0.0
    %336 = vmatpush1.msra.mxu0 %v298
    %337 = vmatprep.subr.mxu0 0.0
    %338 = vmatpush1.msra.mxu0 %v297
    %339 = vmatprep.subr.mxu0 0.0
    %340 = vmatpush1.msra.mxu0 %v296
    %341 = vmatprep.subr.mxu0 0.0
    %342 = vmatpush1.msra.mxu0 %v295
    %343 = vmatprep.subr.mxu0 0.0
    %344 = vmatpush1.msra.mxu0 %v294
    %345 = vmatprep.subr.mxu0 0.0
    %346 = vmatpush2.msra.mxu0 0.0
    %347 = vmatprep.subr.mxu0 0.0
    %348 = vmatpush2.msra.mxu0 0.0
    %349 = vmatprep.subr.mxu0 0.0
    %350 = vmatpush2.msra.mxu0 0.0
    %351 = vmatprep.subr.mxu0 0.0
    %352 = vmatpush2.msra.mxu0 0.0
    %353 = vmatprep.subr.mxu0 0.0
    %354 = vmatpush2.msra.mxu0 0.0
    %355 = vmatprep.subr.mxu0 0.0
    %356 = vmatpush2.msra.mxu0 0.0
    %357 = vmatprep.subr.mxu0 0.0
    %358 = vmatpush2.msra.mxu0 0.0
    %359 = vmatprep.subr.mxu0 0.0
    %360 = vmatpush2.msra.mxu0 0.0
    %361 = vmatprep.subr.mxu0 0.0
    %362 = vmatpush2.msra.mxu0 0.0
    %363 = vmatprep.subr.mxu0 0.0
    %364 = vmatpush2.msra.mxu0 0.0
    %365 = vmatprep.subr.mxu0 0.0
    %366 = vmatpush2.msra.mxu0 0.0
    %367 = vmatprep.subr.mxu0 0.0
    %368 = vmatpush2.msra.mxu0 0.0
    %369 = vmatprep.subr.mxu0 0.0
    %370 = vmatpush2.msra.mxu0 0.0
    %371 = vmatprep.subr.mxu0 0.0
    %372 = vmatpush2.msra.mxu0 0.0
    %373 = vmatprep.subr.mxu0 0.0
    %374 = vmatpush2.msra.mxu0 0.0
    %375 = vmatprep.subr.mxu0 0.0
    %376 = vmatpush2.msra.mxu0 0.0
    %377 = vmatprep.mubr.f32.mxu0 0.0
    %378 = vmatmul.mubr.f32.gmra.mxu0 %v311
    %v379 = vpop.f32.mrf.mxu0
    %v380 = vadd.f32 %v307, %v379
    %v381 = vpop.f32.mrf.mxu0
    %382 = vdwg.mxu0
    %vm383 = vcmask 9216
    %384 = vst.msk [vmem:[#allocation2] sm:$0x3] %vm383, %v380
    // Predicated region
    $region22: #{tpu_custom_call.1} parent=1 // pred_check
      _
    $region23: #{tpu_custom_call.1} parent=1 // pred_check_branch
      %386 = sbr.rel (0) target = $region25
    $region24: #{tpu_custom_call.1} parent=1 // pred_region
      %s388 = ssub.s32 32, 32
      %389 = vsyncadd [#allocation3], %s388
      %s391 = sshll.u32 [#allocation2], 4
      %s392 = int_to_ptr.vmem [resolvable:$true] %s391
      %394 = dma.vmem_to_hbm [thread:$0]  %s392, 32, %s5, [#allocation3]
    $region25: #{tpu_custom_call.1} parent=1 // pred_fallthru
      _
    // Predicated region
    $region26: #{tpu_custom_call.1} parent=1 // pred_check
      _
    $region27: #{tpu_custom_call.1} parent=1 // pred_check_branch
      %396 = sbr.rel (0) target = $region29
    $region28: #{tpu_custom_call.1} parent=1 // pred_region
      %397 = dma.done [#allocation3], 32
    $region29: #{tpu_custom_call.1} parent=1 // pred_fallthru
      _
    %398 = vsyncpa [#allocation3], 1

</llo_original>
